<compile_context>
chip_gen: v5e
topology: v5e:2x2
jax: 0.10.0
libtpu: 0.0.40
codegen_flags: <defaults>
</compile_context>

<pallas_src>
import math
import jax
import jax.numpy as jnp
from jax import lax
from jax.experimental import pallas as pl
from jax.experimental.pallas import tpu as pltpu


def _round_up(x, m):
    return ((int(x) + m - 1) // m) * m


def _padded_bytes(rows, cols, itemsize, sublane=8):
    """VMEM footprint of a [rows, cols] block after (sublane, 128)-lane padding."""
    return (_round_up(max(int(rows), 1), sublane)
            * _round_up(max(int(cols), 1), 128) * itemsize)


def _make_kernel(num_hidden, fused, v_size):
    """Kernel body.  Activations are kept transposed: [features, rows]."""

    def kernel(*refs):
        in0, in1, wvec_ref = refs[0], refs[1], refs[2]
        params = refs[3:-1]
        out_ref = refs[-1]
        tm = out_ref.shape[-1]

        if fused:
            # in0: [2, tm] int32 edge indices; in1: [D, V] table (VMEM-resident).
            idx = in0[...]
            tab = in1[...].astype(jnp.float32)
            iota_v = lax.broadcasted_iota(jnp.int32, (v_size, tm), 0)
            oh1 = (iota_v == idx[0:1, :]).astype(jnp.float32)          # [V, tm]
            oh2 = (iota_v == idx[1:2, :]).astype(jnp.float32)
            e1 = jnp.dot(tab, oh1, preferred_element_type=jnp.float32)  # MXU gather
            e2 = jnp.dot(tab, oh2, preferred_element_type=jnp.float32)  # -> [D, tm]
        else:
            # in0/in1: pre-gathered, transposed embedding streams [D, tm].
            e1 = in0[...].astype(jnp.float32)
            e2 = in1[...].astype(jnp.float32)

        w = wvec_ref[...]                                # [D, 1]
        a = e1 * w                                       # weight_vec * emb1
        b = e2 * w                                       # weight_vec * emb2

        dot = jnp.sum(a * b, axis=0, keepdims=True)      # [1, tm]  (embed_sim2)
        na2 = jnp.sum(a * a, axis=0, keepdims=True)
        nb2 = jnp.sum(b * b, axis=0, keepdims=True)
        eps2 = jnp.float32(1e-16)                        # (1e-8)^2
        # max(sqrt(x), eps) == sqrt(max(x, eps^2)); two separate rsqrts so the
        # product of the squared norms never overflows float32.
        inv_norm = (lax.rsqrt(jnp.maximum(na2, eps2))
                    * lax.rsqrt(jnp.maximum(nb2, eps2)))
        sim1 = dot * inv_norm                            # embed_sim1 (cosine)
        sim2 = dot

        # Linear(2, H0) + ReLU as VPU broadcast FMAs (no concat, no K=2 matmul).
        w0 = params[0][...]                              # [H0, 2]  (PyTorch [out, in])
        b0 = params[1][...]                              # [H0, 1]
        h = jnp.maximum(w0[:, 0:1] * sim1 + w0[:, 1:2] * sim2 + b0, 0.0)   # [H0, tm]

        # Remaining hidden Linear+ReLU layers on the MXU (transposed: W @ h + b).
        for i in range(1, num_hidden):
            wi = params[2 * i][...]                      # [H_i, H_{i-1}]
            bi = params[2 * i + 1][...]                  # [H_i, 1]
            h = jnp.maximum(
                jnp.dot(wi, h, preferred_element_type=jnp.float32) + bi, 0.0)

        # predict_layer: Linear(H_last, 1) as VPU multiply + sublane reduce,
        # producing a lane-dense [1, tm] row.
        wp = params[-2][...]                             # [H_last, 1]
        bp = params[-1][...]                             # [1, 1]
        res = jnp.sum(h * wp, axis=0, keepdims=True) + bp
        out_ref[...] = res[None]                         # [1, 1, tm]

    return kernel


def mlp_mia_forward(edge, emb_matrix0, weight_vec, mlp_params, predict_params,
                    *, tm_max=4096, table_vmem_budget=8 * 1024 * 1024,
                    stream_dtype=jnp.bfloat16):
    """Equivalent of MLP_mia.forward(edge, emb_matrix0, device) -> prediction.view(-1).

    mlp_params:     [(W_i [out, in], b_i [out]), ...]   (PyTorch layouts)
    predict_params: (W_p [1, H_last], b_p [1])
    """
    num_hidden = len(mlp_params)
    assert num_hidden >= 1, "MLP_mia requires at least one hidden layer"

    N = int(edge.shape[0])
    V, D = int(emb_matrix0.shape[0]), int(emb_matrix0.shape[1])
    hidden = [int(W.shape[0]) for (W, _) in mlp_params]

    # Parameters, reshaped to the transposed-column layout used by the kernel.
    wvec_col = jnp.asarray(weight_vec, jnp.float32).reshape(-1, 1)       # [D, 1]
    flat_params = []
    for (W, b) in mlp_params:
        flat_params += [jnp.asarray(W, jnp.float32),
                        jnp.asarray(b, jnp.float32).reshape(-1, 1)]
    Wp, bp = predict_params
    flat_params += [jnp.asarray(Wp, jnp.float32).reshape(-1, 1),         # [H_last, 1]
                    jnp.asarray(bp, jnp.float32).reshape(1, 1)]

    # ---- path + tile selection (generation-aware) ----------------------------
    try:
        vmem_cap = int(pltpu.get_tpu_info().vmem_capacity_bytes)
    except Exception:
        vmem_cap = 64 * 1024 * 1024          # conservative default (v7x per-core VMEM)

    table_bytes = _padded_bytes(D, V, 4)
    fused = (2 * table_bytes <= min(int(table_vmem_budget), vmem_cap // 8)
             and V <= 4096)

    stream_item = jnp.dtype(stream_dtype).itemsize
    d8, v8, h8 = _round_up(D, 8), _round_up(V, 8), _round_up(max(hidden), 8)

    # Constant VMEM: params (+ table), each double-buffered by the pipeline.
    const_bytes = 2 * _padded_bytes(D, 1, 4)
    const_bytes += sum(2 * _padded_bytes(p.shape[0], p.shape[1], 4)
                       for p in flat_params)
    if fused:
        const_bytes += 2 * table_bytes

    # Bytes per lane-column of a tile: pipelined I/O buffers + live temporaries.
    if fused:
        per_tm = 2 * 8 * 4                                   # edge block [2->8, tm] int32
        inter = (2 * v8 + 4 * d8 + 2 * h8 + 32) * 4          # one-hots, e/a/b, h, misc
    else:
        per_tm = 2 * 2 * _round_up(D, 16 if stream_item == 2 else 8) * stream_item
        inter = (4 * d8 + 2 * h8 + 32) * 4
    per_tm += 2 * 8 * 4                                      # output block [1, 1->8, tm]
    per_tm += 2 * inter                                      # 2x headroom for Mosaic temps

    budget = min(vmem_cap // 2, 64 * 1024 * 1024)
    tm_fit = max(128, ((budget - const_bytes) // per_tm // 128) * 128)
    if N >= 256:
        n_cap = _round_up((N + 1) // 2, 128)    # grid >= 2: both v7x TCs get work
    else:
        n_cap = _round_up(max(N, 1), 128)
    tm = max(128, min(tm_fit, _round_up(tm_max, 128), n_cap))

    grid = pl.cdiv(N, tm)
    n_pad = grid * tm
    need = const_bytes + per_tm * tm
    vmem_limit = int(min(max(2 * need, 32 * 1024 * 1024), 0.9 * vmem_cap))

    # ---- inputs ---------------------------------------------------------------
    if fused:
        edge_t = jnp.asarray(edge, jnp.int32).T                       # [2, N]
        if n_pad != N:
            edge_t = jnp.pad(edge_t, ((0, 0), (0, n_pad - N)))        # pad rows -> index 0
        table_t = jnp.asarray(emb_matrix0).T                          # [D, V] VMEM-resident
        data_inputs = (edge_t, table_t)
        data_specs = [
            pl.BlockSpec((2, tm), lambda i: (0, i)),
            pl.BlockSpec((D, V), lambda i: (0, 0)),
        ]
        data_bytes = 2 * n_pad * 4 + table_bytes
        gather_flops = 4 * V * D
    else:
        # TODO(synk): replace with an in-kernel DMA gather (pl.ANY + prefetched
        # indices) to avoid this extra gather/transpose HBM pass.
        emb1_t = jnp.take(emb_matrix0, edge[:, 0], axis=0).T.astype(stream_dtype)
        emb2_t = jnp.take(emb_matrix0, edge[:, 1], axis=0).T.astype(stream_dtype)
        if n_pad != N:
            pad = ((0, 0), (0, n_pad - N))
            emb1_t = jnp.pad(emb1_t, pad)
            emb2_t = jnp.pad(emb2_t, pad)
        data_inputs = (emb1_t, emb2_t)
        data_specs = [
            pl.BlockSpec((D, tm), lambda i: (0, i)),
            pl.BlockSpec((D, tm), lambda i: (0, i)),
        ]
        data_bytes = 2 * n_pad * D * stream_item
        gather_flops = 0

    const_specs = [pl.BlockSpec((D, 1), lambda i: (0, 0))]
    const_specs += [pl.BlockSpec(tuple(int(s) for s in p.shape), lambda i: (0, 0))
                    for p in flat_params]

    flops_row = (gather_flops + 10 * D + 4 * hidden[0]
                 + sum(2 * hidden[i - 1] * hidden[i] for i in range(1, num_hidden))
                 + 2 * hidden[-1])
    cost = pl.CostEstimate(
        flops=int(n_pad * flops_row),
        transcendentals=int(2 * n_pad),                      # two rsqrt per row
        bytes_accessed=int(data_bytes + n_pad * 4
                           + 4 * (sum(int(p.size) for p in flat_params) + D)),
    )

    out = pl.pallas_call(
        _make_kernel(num_hidden, fused, V),
        out_shape=jax.ShapeDtypeStruct((grid, 1, tm), jnp.float32),
        grid=(grid,),
        in_specs=data_specs + const_specs,
        out_specs=pl.BlockSpec((1, 1, tm), lambda i: (i, 0, 0)),
        compiler_params=pltpu.CompilerParams(
            dimension_semantics=("parallel",),
            vmem_limit_bytes=vmem_limit,
        ),
        cost_estimate=cost,
    )(*data_inputs, wvec_col, *flat_params)

    return out.reshape(-1)[:N]                               # prediction.view(-1)


def init_params(key, emb_dim, hidden_layer):
    """Deterministic parameter init mirroring MLP_mia.__init__ (PyTorch layouts)."""
    keys = jax.random.split(key, len(hidden_layer) + 2)

    # weight_vec = nn.init.normal_(empty(1, emb_dim))
    weight_vec = jax.random.normal(keys[0], (1, emb_dim), jnp.float32)

    mlp_params = []
    in_dim = 2
    for i, h in enumerate(hidden_layer):
        bound = math.sqrt(6.0 / (in_dim + h))                # xavier_uniform_
        W = jax.random.uniform(keys[i + 1], (h, in_dim), jnp.float32, -bound, bound)
        b = jnp.zeros((h,), jnp.float32)                     # biases zeroed in __init__
        mlp_params.append((W, b))
        in_dim = h

    # kaiming_uniform_(a=1, nonlinearity='sigmoid') -> gain=1, bound = sqrt(3 / fan_in)
    bound = math.sqrt(3.0 / in_dim)
    Wp = jax.random.uniform(keys[-1], (1, in_dim), jnp.float32, -bound, bound)
    bp = jnp.zeros((1,), jnp.float32)
    return weight_vec, mlp_params, (Wp, bp)


def _reference_forward(edge, emb_matrix0, weight_vec, mlp_params, predict_params):
    """Pure-JAX reference mirroring the PyTorch forward."""
    emb1 = emb_matrix0[edge[:, 0], :]
    emb2 = emb_matrix0[edge[:, 1], :]
    wv = weight_vec.reshape(1, -1)
    a = wv * emb1
    b = wv * emb2
    dot = jnp.sum(a * b, axis=1)
    na = jnp.sqrt(jnp.sum(a * a, axis=1))
    nb = jnp.sqrt(jnp.sum(b * b, axis=1))
    sim1 = dot / (jnp.maximum(na, 1e-8) * jnp.maximum(nb, 1e-8))
    h = jnp.stack([sim1, dot], axis=1)
    for (W, bias) in mlp_params:
        h = jnp.maximum(h @ W.T + bias, 0.0)
    Wp, bp = predict_params
    return (h @ Wp.T + bp).reshape(-1)


if __name__ == "__main__":
    key = jax.random.PRNGKey(0)
    k_emb, k_edge, k_par, k_edge2 = jax.random.split(key, 4)

    V, D, N = 64, 32, 8
    hidden_layer = [32, 32]

    emb_matrix0 = jax.random.normal(k_emb, (V, D), jnp.float32)
    edge = jax.random.randint(k_edge, (N, 2), 0, V, dtype=jnp.int32)
    weight_vec, mlp_params, predict_params = init_params(k_par, D, hidden_layer)

    # 1) Fused-gather path, single tile.
    pred = mlp_mia_forward(edge, emb_matrix0, weight_vec, mlp_params, predict_params)
    pred = jax.block_until_ready(pred)
    ref = _reference_forward(edge, emb_matrix0, weight_vec, mlp_params, predict_params)
    assert pred.shape == (N,)
    assert jnp.allclose(pred, ref, atol=1e-4, rtol=1e-4)

    # 2) Fused-gather path, multiple tiles + tail padding.
    N2 = 300
    edge2 = jax.random.randint(k_edge2, (N2, 2), 0, V, dtype=jnp.int32)
    ref2 = _reference_forward(edge2, emb_matrix0, weight_vec, mlp_params, predict_params)
    pred2 = mlp_mia_forward(edge2, emb_matrix0, weight_vec, mlp_params, predict_params,
                            tm_max=128)
    pred2 = jax.block_until_ready(pred2)
    assert pred2.shape == (N2,)
    assert jnp.allclose(pred2, ref2, atol=1e-4, rtol=1e-4)

    # 3) Fallback streaming path (table budget forced to 0), float32 streams.
    pred3 = mlp_mia_forward(edge2, emb_matrix0, weight_vec, mlp_params, predict_params,
                            tm_max=256, table_vmem_budget=0,
                            stream_dtype=jnp.float32)
    pred3 = jax.block_until_ready(pred3)
    assert pred3.shape == (N2,)
    assert jnp.allclose(pred3, ref2, atol=1e-4, rtol=1e-4)

    # 4) Fallback streaming path with default bfloat16 streams (loose tolerance).
    pred4 = mlp_mia_forward(edge2, emb_matrix0, weight_vec, mlp_params, predict_params,
                            tm_max=256, table_vmem_budget=0)
    pred4 = jax.block_until_ready(pred4)
    assert pred4.shape == (N2,)
    assert jnp.allclose(pred4, ref2, atol=0.25, rtol=0.1)

    print("KERNEL_OK")
</pallas_src>

<mosaic_0001>
module attributes {stable_mosaic.version = 11 : i64} {
  func.func @kernel(%arg0: i32, %arg1: memref<2x128xi32, #tpu.memory_space<vmem>>, %arg2: memref<32x64xf32, #tpu.memory_space<vmem>>, %arg3: memref<32x1xf32, #tpu.memory_space<vmem>>, %arg4: memref<32x2xf32, #tpu.memory_space<vmem>>, %arg5: memref<32x1xf32, #tpu.memory_space<vmem>>, %arg6: memref<32x32xf32, #tpu.memory_space<vmem>>, %arg7: memref<32x1xf32, #tpu.memory_space<vmem>>, %arg8: memref<32x1xf32, #tpu.memory_space<vmem>>, %arg9: memref<1x1xf32, #tpu.memory_space<vmem>>, %arg10: memref<1x1x128xf32, #tpu.memory_space<vmem>>) attributes {dimension_semantics = [#tpu.dimension_semantics<parallel>], iteration_bounds = array<i64: 1>, scalar_prefetch = 0 : i64, scratch_operands = 0 : i64, tpu.core_type = #tpu.core_type<tc>, window_params = [{transform_indices = @transform_0, window_bounds = array<i64: 2, 128>}, {pipeline_mode = #tpu.pipeline_mode<synchronous>, transform_indices = @transform_1, window_bounds = array<i64: 32, 64>}, {pipeline_mode = #tpu.pipeline_mode<synchronous>, transform_indices = @transform_2, window_bounds = array<i64: 32, 1>}, {pipeline_mode = #tpu.pipeline_mode<synchronous>, transform_indices = @transform_3, window_bounds = array<i64: 32, 2>}, {pipeline_mode = #tpu.pipeline_mode<synchronous>, transform_indices = @transform_4, window_bounds = array<i64: 32, 1>}, {pipeline_mode = #tpu.pipeline_mode<synchronous>, transform_indices = @transform_5, window_bounds = array<i64: 32, 32>}, {pipeline_mode = #tpu.pipeline_mode<synchronous>, transform_indices = @transform_6, window_bounds = array<i64: 32, 1>}, {pipeline_mode = #tpu.pipeline_mode<synchronous>, transform_indices = @transform_7, window_bounds = array<i64: 32, 1>}, {pipeline_mode = #tpu.pipeline_mode<synchronous>, transform_indices = @transform_8, window_bounds = array<i64: 1, 1>}, {transform_indices = @transform_9, window_bounds = array<i64: 1, 1, 128>}]} {
    %c0 = arith.constant 0 : index
    %c0_0 = arith.constant 0 : index
    %0 = vector.load %arg1[%c0, %c0_0] : memref<2x128xi32, #tpu.memory_space<vmem>>, vector<2x128xi32>
    %c0_1 = arith.constant 0 : index
    %c0_2 = arith.constant 0 : index
    %1 = vector.load %arg2[%c0_1, %c0_2] : memref<32x64xf32, #tpu.memory_space<vmem>>, vector<32x64xf32>
    %2 = tpu.iota {dimensions = array<i32: 0>} : vector<64x128xi32>
    %3 = vector.extract_strided_slice %0 {offsets = [0, 0], sizes = [1, 128], strides = [1, 1]} : vector<2x128xi32> to vector<1x128xi32>
    %4 = vector.broadcast %3 : vector<1x128xi32> to vector<64x128xi32>
    %5 = arith.cmpi eq, %2, %4 : vector<64x128xi32>
    %6 = arith.extui %5 : vector<64x128xi1> to vector<64x128xi32>
    %7 = arith.sitofp %6 : vector<64x128xi32> to vector<64x128xf32>
    %8 = vector.extract_strided_slice %0 {offsets = [1, 0], sizes = [1, 128], strides = [1, 1]} : vector<2x128xi32> to vector<1x128xi32>
    %9 = vector.broadcast %8 : vector<1x128xi32> to vector<64x128xi32>
    %10 = arith.cmpi eq, %2, %9 : vector<64x128xi32>
    %11 = arith.extui %10 : vector<64x128xi1> to vector<64x128xi32>
    %12 = arith.sitofp %11 : vector<64x128xi32> to vector<64x128xf32>
    %cst = arith.constant dense<0.000000e+00> : vector<32x128xf32>
    %13 = tpu.matmul %1, %7, %cst {dimension_numbers = #tpu.dot_dimension_numbers<[1], [0], [0], [1], [0, 0, 1, 1], [], []>} : vector<32x64xf32>, vector<64x128xf32>, vector<32x128xf32> -> vector<32x128xf32>
    %cst_3 = arith.constant dense<0.000000e+00> : vector<32x128xf32>
    %14 = tpu.matmul %1, %12, %cst_3 {dimension_numbers = #tpu.dot_dimension_numbers<[1], [0], [0], [1], [0, 0, 1, 1], [], []>} : vector<32x64xf32>, vector<64x128xf32>, vector<32x128xf32> -> vector<32x128xf32>
    %c0_4 = arith.constant 0 : index
    %c0_5 = arith.constant 0 : index
    %15 = vector.load %arg3[%c0_4, %c0_5] : memref<32x1xf32, #tpu.memory_space<vmem>>, vector<32x1xf32>
    %16 = vector.broadcast %15 : vector<32x1xf32> to vector<32x128xf32>
    %17 = arith.mulf %13, %16 : vector<32x128xf32>
    %18 = vector.broadcast %15 : vector<32x1xf32> to vector<32x128xf32>
    %19 = arith.mulf %14, %18 : vector<32x128xf32>
    %20 = arith.mulf %17, %19 : vector<32x128xf32>
    %cst_6 = arith.constant dense<0.000000e+00> : vector<128xf32>
    %21 = vector.multi_reduction <add>, %20, %cst_6 [0] : vector<32x128xf32> to vector<128xf32>
    %22 = vector.shape_cast %21 : vector<128xf32> to vector<1x128xf32>
    %23 = arith.mulf %17, %17 : vector<32x128xf32>
    %cst_7 = arith.constant dense<0.000000e+00> : vector<128xf32>
    %24 = vector.multi_reduction <add>, %23, %cst_7 [0] : vector<32x128xf32> to vector<128xf32>
    %25 = vector.shape_cast %24 : vector<128xf32> to vector<1x128xf32>
    %26 = arith.mulf %19, %19 : vector<32x128xf32>
    %cst_8 = arith.constant dense<0.000000e+00> : vector<128xf32>
    %27 = vector.multi_reduction <add>, %26, %cst_8 [0] : vector<32x128xf32> to vector<128xf32>
    %28 = vector.shape_cast %27 : vector<128xf32> to vector<1x128xf32>
    %cst_9 = arith.constant 1.000000e-16 : f32
    %29 = vector.broadcast %cst_9 : f32 to vector<1x128xf32>
    %30 = arith.maximumf %25, %29 : vector<1x128xf32>
    %31 = math.rsqrt %30 : vector<1x128xf32>
    %cst_10 = arith.constant 1.000000e-16 : f32
    %32 = vector.broadcast %cst_10 : f32 to vector<1x128xf32>
    %33 = arith.maximumf %28, %32 : vector<1x128xf32>
    %34 = math.rsqrt %33 : vector<1x128xf32>
    %35 = arith.mulf %31, %34 : vector<1x128xf32>
    %36 = arith.mulf %22, %35 : vector<1x128xf32>
    %c0_11 = arith.constant 0 : index
    %c0_12 = arith.constant 0 : index
    %37 = vector.load %arg4[%c0_11, %c0_12] : memref<32x2xf32, #tpu.memory_space<vmem>>, vector<32x2xf32>
    %c0_13 = arith.constant 0 : index
    %c0_14 = arith.constant 0 : index
    %38 = vector.load %arg5[%c0_13, %c0_14] : memref<32x1xf32, #tpu.memory_space<vmem>>, vector<32x1xf32>
    %39 = vector.extract_strided_slice %37 {offsets = [0, 0], sizes = [32, 1], strides = [1, 1]} : vector<32x2xf32> to vector<32x1xf32>
    %40 = vector.broadcast %39 : vector<32x1xf32> to vector<32x128xf32>
    %41 = vector.broadcast %36 : vector<1x128xf32> to vector<32x128xf32>
    %42 = arith.mulf %40, %41 : vector<32x128xf32>
    %43 = vector.extract_strided_slice %37 {offsets = [0, 1], sizes = [32, 1], strides = [1, 1]} : vector<32x2xf32> to vector<32x1xf32>
    %44 = vector.broadcast %43 : vector<32x1xf32> to vector<32x128xf32>
    %45 = vector.broadcast %22 : vector<1x128xf32> to vector<32x128xf32>
    %46 = arith.mulf %44, %45 : vector<32x128xf32>
    %47 = arith.addf %42, %46 : vector<32x128xf32>
    %48 = vector.broadcast %38 : vector<32x1xf32> to vector<32x128xf32>
    %49 = arith.addf %47, %48 : vector<32x128xf32>
    %cst_15 = arith.constant 0.000000e+00 : f32
    %50 = vector.broadcast %cst_15 : f32 to vector<32x128xf32>
    %51 = arith.maximumf %49, %50 : vector<32x128xf32>
    %c0_16 = arith.constant 0 : index
    %c0_17 = arith.constant 0 : index
    %52 = vector.load %arg6[%c0_16, %c0_17] : memref<32x32xf32, #tpu.memory_space<vmem>>, vector<32x32xf32>
    %c0_18 = arith.constant 0 : index
    %c0_19 = arith.constant 0 : index
    %53 = vector.load %arg7[%c0_18, %c0_19] : memref<32x1xf32, #tpu.memory_space<vmem>>, vector<32x1xf32>
    %cst_20 = arith.constant dense<0.000000e+00> : vector<32x128xf32>
    %54 = tpu.matmul %52, %51, %cst_20 {dimension_numbers = #tpu.dot_dimension_numbers<[1], [0], [0], [1], [0, 0, 1, 1], [], []>} : vector<32x32xf32>, vector<32x128xf32>, vector<32x128xf32> -> vector<32x128xf32>
    %55 = vector.broadcast %53 : vector<32x1xf32> to vector<32x128xf32>
    %56 = arith.addf %54, %55 : vector<32x128xf32>
    %cst_21 = arith.constant 0.000000e+00 : f32
    %57 = vector.broadcast %cst_21 : f32 to vector<32x128xf32>
    %58 = arith.maximumf %56, %57 : vector<32x128xf32>
    %c0_22 = arith.constant 0 : index
    %c0_23 = arith.constant 0 : index
    %59 = vector.load %arg8[%c0_22, %c0_23] : memref<32x1xf32, #tpu.memory_space<vmem>>, vector<32x1xf32>
    %c0_24 = arith.constant 0 : index
    %c0_25 = arith.constant 0 : index
    %60 = vector.load %arg9[%c0_24, %c0_25] : memref<1x1xf32, #tpu.memory_space<vmem>>, vector<1x1xf32>
    %61 = vector.broadcast %59 : vector<32x1xf32> to vector<32x128xf32>
    %62 = arith.mulf %58, %61 : vector<32x128xf32>
    %cst_26 = arith.constant dense<0.000000e+00> : vector<128xf32>
    %63 = vector.multi_reduction <add>, %62, %cst_26 [0] : vector<32x128xf32> to vector<128xf32>
    %64 = vector.shape_cast %63 : vector<128xf32> to vector<1x128xf32>
    %65 = vector.broadcast %60 : vector<1x1xf32> to vector<1x128xf32>
    %66 = arith.addf %64, %65 : vector<1x128xf32>
    %67 = vector.shape_cast %66 : vector<1x128xf32> to vector<1x1x128xf32>
    %c0_27 = arith.constant 0 : index
    %c0_28 = arith.constant 0 : index
    %c0_29 = arith.constant 0 : index
    %68 = vector.load %arg10[%c0_27, %c0_28, %c0_29] : memref<1x1x128xf32, #tpu.memory_space<vmem>>, vector<1x1x128xf32>
    tpu.vector_store %arg10[%c0_27, %c0_28, %c0_29], %67 {strides = array<i32>} : memref<1x1x128xf32, #tpu.memory_space<vmem>>, vector<1x1x128xf32>,
    return
  }
  func.func @transform_0(%arg0: i32) -> (i32, i32) {
    %c0_i32 = arith.constant 0 : i32
    %c0_i32_0 = arith.constant 0 : i32
    return %c0_i32, %arg0 : i32, i32
  }
  func.func @transform_1(%arg0: i32) -> (i32, i32) {
    %c0_i32 = arith.constant 0 : i32
    %c0_i32_0 = arith.constant 0 : i32
    %c0_i32_1 = arith.constant 0 : i32
    return %c0_i32, %c0_i32_0 : i32, i32
  }
  func.func @transform_2(%arg0: i32) -> (i32, i32) {
    %c0_i32 = arith.constant 0 : i32
    %c0_i32_0 = arith.constant 0 : i32
    %c0_i32_1 = arith.constant 0 : i32
    return %c0_i32, %c0_i32_0 : i32, i32
  }
  func.func @transform_3(%arg0: i32) -> (i32, i32) {
    %c0_i32 = arith.constant 0 : i32
    %c0_i32_0 = arith.constant 0 : i32
    %c0_i32_1 = arith.constant 0 : i32
    return %c0_i32, %c0_i32_0 : i32, i32
  }
  func.func @transform_4(%arg0: i32) -> (i32, i32) {
    %c0_i32 = arith.constant 0 : i32
    %c0_i32_0 = arith.constant 0 : i32
    %c0_i32_1 = arith.constant 0 : i32
    return %c0_i32, %c0_i32_0 : i32, i32
  }
  func.func @transform_5(%arg0: i32) -> (i32, i32) {
    %c0_i32 = arith.constant 0 : i32
    %c0_i32_0 = arith.constant 0 : i32
    %c0_i32_1 = arith.constant 0 : i32
    return %c0_i32, %c0_i32_0 : i32, i32
  }
  func.func @transform_6(%arg0: i32) -> (i32, i32) {
    %c0_i32 = arith.constant 0 : i32
    %c0_i32_0 = arith.constant 0 : i32
    %c0_i32_1 = arith.constant 0 : i32
    return %c0_i32, %c0_i32_0 : i32, i32
  }
  func.func @transform_7(%arg0: i32) -> (i32, i32) {
    %c0_i32 = arith.constant 0 : i32
    %c0_i32_0 = arith.constant 0 : i32
    %c0_i32_1 = arith.constant 0 : i32
    return %c0_i32, %c0_i32_0 : i32, i32
  }
  func.func @transform_8(%arg0: i32) -> (i32, i32) {
    %c0_i32 = arith.constant 0 : i32
    %c0_i32_0 = arith.constant 0 : i32
    %c0_i32_1 = arith.constant 0 : i32
    return %c0_i32, %c0_i32_0 : i32, i32
  }
  func.func @transform_9(%arg0: i32) -> (i32, i32, i32) {
    %c0_i32 = arith.constant 0 : i32
    %c0_i32_0 = arith.constant 0 : i32
    %c0_i32_1 = arith.constant 0 : i32
    return %arg0, %c0_i32, %c0_i32_0 : i32, i32, i32
  }
}

</mosaic_0001>

<llo_original>
// kernel: tpu_custom_call.1
$region0: #{tpu_custom_call.1}
  #allocation0 [shape = 'u32[]', space=smem, size = 0x4, offset = 0x4, fixed_abs, tag = 'smem constant byte address 0x4 - core index']
  #allocation1 [shape = 'u32[72,128]{1,0:T(1,128)}', space=vmem, size = 0x9000, scoped, tag = 'internal scratch']
  #allocation2 [shape = 'f32[1,1]{1,0:T(1,128)S(1)}', space=vmem, size = 0x200, scoped, tag = 'scoped memory for tpu_custom_call.1']
  %s0 = inlined_call_operand.vmem [shape: s32[2,128], index: 0, kind: input, shape index: {}]
  %s1 = inlined_call_operand.vmem [shape: f32[32,64], index: 1, kind: input, shape index: {}]
  %s2 = inlined_call_operand.vmem [shape: f32[32,1], index: 2, kind: input, shape index: {}]
  %s3 = inlined_call_operand.vmem [shape: f32[32,2], index: 3, kind: input, shape index: {}]
  %s4 = inlined_call_operand.vmem [shape: f32[32,1], index: 4, kind: input, shape index: {}]
  %s5 = inlined_call_operand.vmem [shape: f32[32,32], index: 5, kind: input, shape index: {}]
  %s6 = inlined_call_operand.vmem [shape: f32[32,1], index: 6, kind: input, shape index: {}]
  %s7 = inlined_call_operand.vmem [shape: f32[32,1], index: 7, kind: input, shape index: {}]
  %s8 = inlined_call_operand.<no memory space> [shape: f32[1,1], index: 8, kind: input, shape index: {}]
  %s9 = inlined_call_operand.hbm [shape: f32[1,1,128], index: 9, kind: output, shape index: {}]
  %s10 = sld [smem:[#allocation0]]
  $region46: #{tpu_custom_call.1} parent=0
    _
  %s12 = ssub.s32 1, %s10
  %s13 = scalar_select 0, %s12, %s10
  %v14 = vstv %s8
  %15 = vst [vmem:[#allocation2] sm:$0x1] %v14
  $region1: #{tpu_custom_call.1} parent=0
    #allocation3 [shape = 'u8[512]{0}', space=vmem, size = 0x400, scoped, tag = 'output window, operand 0, single buffered']
    #allocation4 [shape = 's32[1]{0}', space=sflag, size = 0x4, scoped, tag = 'scoped memory for tpu_custom_call.1']
    %16 = vsyncpa [#allocation4], 0
    // Predicated region
    $region2: #{tpu_custom_call.1} parent=1 // pred_check
      _
    $region3: #{tpu_custom_call.1} parent=1 // pred_check_branch
      %18 = sbr.rel (0) target = $region5
    $region4: #{tpu_custom_call.1} parent=1 // pred_region
      _
    $region5: #{tpu_custom_call.1} parent=1 // pred_fallthru
      _
    // Predicated region
    $region6: #{tpu_custom_call.1} parent=1 // pred_check
      _
    $region7: #{tpu_custom_call.1} parent=1 // pred_check_branch
      %20 = sbr.rel (0) target = $region9
    $region8: #{tpu_custom_call.1} parent=1 // pred_region
      _
    $region9: #{tpu_custom_call.1} parent=1 // pred_fallthru
      _
    // Predicated region
    $region10: #{tpu_custom_call.1} parent=1 // pred_check
      _
    $region11: #{tpu_custom_call.1} parent=1 // pred_check_branch
      %22 = sbr.rel (0) target = $region13
    $region12: #{tpu_custom_call.1} parent=1 // pred_region
      _
    $region13: #{tpu_custom_call.1} parent=1 // pred_fallthru
      _
    // Predicated region
    $region14: #{tpu_custom_call.1} parent=1 // pred_check
      _
    $region15: #{tpu_custom_call.1} parent=1 // pred_check_branch
      %24 = sbr.rel (0) target = $region17
    $region16: #{tpu_custom_call.1} parent=1 // pred_region
      _
    $region17: #{tpu_custom_call.1} parent=1 // pred_fallthru
      _
    // Predicated region
    $region18: #{tpu_custom_call.1} parent=1 // pred_check
      _
    $region19: #{tpu_custom_call.1} parent=1 // pred_check_branch
      %26 = sbr.rel (0) target = $region21
    $region20: #{tpu_custom_call.1} parent=1 // pred_region
      _
    $region21: #{tpu_custom_call.1} parent=1 // pred_fallthru
      _
    // Predicated region
    $region22: #{tpu_custom_call.1} parent=1 // pred_check
      _
    $region23: #{tpu_custom_call.1} parent=1 // pred_check_branch
      %28 = sbr.rel (0) target = $region25
    $region24: #{tpu_custom_call.1} parent=1 // pred_region
      _
    $region25: #{tpu_custom_call.1} parent=1 // pred_fallthru
      _
    // Predicated region
    $region26: #{tpu_custom_call.1} parent=1 // pred_check
      _
    $region27: #{tpu_custom_call.1} parent=1 // pred_check_branch
      %30 = sbr.rel (0) target = $region29
    $region28: #{tpu_custom_call.1} parent=1 // pred_region
      _
    $region29: #{tpu_custom_call.1} parent=1 // pred_fallthru
      _
    // Predicated region
    $region30: #{tpu_custom_call.1} parent=1 // pred_check
      _
    $region31: #{tpu_custom_call.1} parent=1 // pred_check_branch
      %32 = sbr.rel (0) target = $region33
    $region32: #{tpu_custom_call.1} parent=1 // pred_region
      _
    $region33: #{tpu_custom_call.1} parent=1 // pred_fallthru
      _
    // Predicated region
    $region34: #{tpu_custom_call.1} parent=1 // pred_check
      _
    $region35: #{tpu_custom_call.1} parent=1 // pred_check_branch
      %34 = sbr.rel (0) target = $region37
    $region36: #{tpu_custom_call.1} parent=1 // pred_region
      _
    $region37: #{tpu_custom_call.1} parent=1 // pred_fallthru
      _
    %v35 = vld [vmem:[%s0] sm:$0x3]
    %v36 = vld [vmem:[%s1] sm:$0xff]
    %v37 = vld [vmem:[%s1 + $0x8] sm:$0xff]
    %v38 = vld [vmem:[%s1 + $0x10] sm:$0xff]
    %v39 = vld [vmem:[%s1 + $0x18] sm:$0xff]
    %v40 = vlaneseq
    %v41 = vshrl.u32 %v40, 7
    %v42 = vadd.s32 %v41, 8
    %v43 = vadd.s32 %v41, 16
    %v44 = vadd.s32 %v41, 24
    %v45 = vadd.s32 %v41, 32
    %v46 = vadd.s32 %v41, 40
    %v47 = vadd.s32 %v41, 48
    %v48 = vadd.s32 %v41, 56
    %v49 = vperm.slane %v35, 0
    %vm50 = vcmp.eq.s32.totalorder %v41, %v49
    %vm51 = vcmp.eq.s32.totalorder %v42, %v49
    %vm52 = vcmp.eq.s32.totalorder %v43, %v49
    %vm53 = vcmp.eq.s32.totalorder %v44, %v49
    %vm54 = vcmp.eq.s32.totalorder %v45, %v49
    %vm55 = vcmp.eq.s32.totalorder %v46, %v49
    %vm56 = vcmp.eq.s32.totalorder %v47, %v49
    %vm57 = vcmp.eq.s32.totalorder %v48, %v49
    %v58 = vsel %vm50, 1, 0
    %v59 = vsel %vm51, 1, 0
    %v60 = vsel %vm52, 1, 0
    %v61 = vsel %vm53, 1, 0
    %v62 = vsel %vm54, 1, 0
    %v63 = vsel %vm55, 1, 0
    %v64 = vsel %vm56, 1, 0
    %v65 = vsel %vm57, 1, 0
    %v66 = vcvt.s32.f32 %v58
    %v67 = vcvt.s32.f32 %v59
    %v68 = vcvt.s32.f32 %v60
    %v69 = vcvt.s32.f32 %v61
    %v70 = vcvt.s32.f32 %v62
    %v71 = vcvt.s32.f32 %v63
    %v72 = vcvt.s32.f32 %v64
    %v73 = vcvt.s32.f32 %v65
    %v74 = vperm.slane %v35, 1
    %vm75 = vcmp.eq.s32.totalorder %v41, %v74
    %vm76 = vcmp.eq.s32.totalorder %v42, %v74
    %vm77 = vcmp.eq.s32.totalorder %v43, %v74
    %vm78 = vcmp.eq.s32.totalorder %v44, %v74
    %vm79 = vcmp.eq.s32.totalorder %v45, %v74
    %vm80 = vcmp.eq.s32.totalorder %v46, %v74
    %vm81 = vcmp.eq.s32.totalorder %v47, %v74
    %vm82 = vcmp.eq.s32.totalorder %v48, %v74
    %v83 = vsel %vm75, 1, 0
    %v84 = vsel %vm76, 1, 0
    %v85 = vsel %vm77, 1, 0
    %v86 = vsel %vm78, 1, 0
    %v87 = vsel %vm79, 1, 0
    %v88 = vsel %vm80, 1, 0
    %v89 = vsel %vm81, 1, 0
    %v90 = vsel %vm82, 1, 0
    %v91 = vcvt.s32.f32 %v83
    %v92 = vcvt.s32.f32 %v84
    %v93 = vcvt.s32.f32 %v85
    %v94 = vcvt.s32.f32 %v86
    %v95 = vcvt.s32.f32 %v87
    %v96 = vcvt.s32.f32 %v88
    %v97 = vcvt.s32.f32 %v89
    %v98 = vcvt.s32.f32 %v90
    %vm99 = vcmask 523264
    %v101 = vsel %vm99, %v36, 0
    %v104 = vsel %vm99, %v37, 0
    %v107 = vsel %vm99, %v38, 0
    %v110 = vsel %vm99, %v39, 0
    %112 = vmatpush.msra.mxu0 0.0
    %113 = vmatpush.msra.mxu0 0.0
    %114 = vmatpush.msra.mxu0 0.0
    %115 = vmatpush.msra.mxu0 0.0
    %116 = vmatpush.msra.mxu0 0.0
    %117 = vmatpush.msra.mxu0 0.0
    %118 = vmatpush.msra.mxu0 0.0
    %119 = vmatpush.msra.mxu0 0.0
    %120 = vmatpush.msra.mxu0 %v73
    %121 = vmatpush.msra.mxu0 %v72
    %122 = vmatpush.msra.mxu0 %v71
    %123 = vmatpush.msra.mxu0 %v70
    %124 = vmatpush.msra.mxu0 %v69
    %125 = vmatpush.msra.mxu0 %v68
    %126 = vmatpush.msra.mxu0 %v67
    %127 = vmatpush.msra.mxu0 %v66
    %128 = vmatmul.f32.gmra.mxu0 %v101
    %v129 = vpop.f32.mrf.mxu0
    %v130 = vadd.f32 0.0, %v129
    %131 = vmatmul.f32.gmra.mxu0 %v104
    %v132 = vpop.f32.mrf.mxu0
    %v133 = vadd.f32 0.0, %v132
    %134 = vmatmul.f32.gmra.mxu0 %v107
    %v135 = vpop.f32.mrf.mxu0
    %v136 = vadd.f32 0.0, %v135
    %137 = vmatmul.f32.gmra.mxu0 %v110
    %v138 = vpop.f32.mrf.mxu0
    %v139 = vadd.f32 0.0, %v138
    %140 = vdwg.mxu0
    %141 = vmatpush.msra.mxu0 0.0
    %142 = vmatpush.msra.mxu0 0.0
    %143 = vmatpush.msra.mxu0 0.0
    %144 = vmatpush.msra.mxu0 0.0
    %145 = vmatpush.msra.mxu0 0.0
    %146 = vmatpush.msra.mxu0 0.0
    %147 = vmatpush.msra.mxu0 0.0
    %148 = vmatpush.msra.mxu0 0.0
    %149 = vmatpush.msra.mxu0 %v98
    %150 = vmatpush.msra.mxu0 %v97
    %151 = vmatpush.msra.mxu0 %v96
    %152 = vmatpush.msra.mxu0 %v95
    %153 = vmatpush.msra.mxu0 %v94
    %154 = vmatpush.msra.mxu0 %v93
    %155 = vmatpush.msra.mxu0 %v92
    %156 = vmatpush.msra.mxu0 %v91
    %157 = vmatmul.f32.gmra.mxu0 %v101
    %v158 = vpop.f32.mrf.mxu0
    %v159 = vadd.f32 0.0, %v158
    %160 = vmatmul.f32.gmra.mxu0 %v104
    %v161 = vpop.f32.mrf.mxu0
    %v162 = vadd.f32 0.0, %v161
    %163 = vmatmul.f32.gmra.mxu0 %v107
    %v164 = vpop.f32.mrf.mxu0
    %v165 = vadd.f32 0.0, %v164
    %166 = vmatmul.f32.gmra.mxu0 %v110
    %v167 = vpop.f32.mrf.mxu0
    %v168 = vadd.f32 0.0, %v167
    %169 = vdwg.mxu0
    %v170 = vld [vmem:[%s2] sm:$0xff]
    %v171 = vld [vmem:[%s2 + $0x8] sm:$0xff]
    %v172 = vld [vmem:[%s2 + $0x10] sm:$0xff]
    %v173 = vld [vmem:[%s2 + $0x18] sm:$0xff]
    %175 = vset.pattern.permute.xlu0 0
    %176 = vperm.xlu0 %175, %v170
    %v177 = vpop.permute.xlu0 %176
    %180 = vset.pattern.permute.xlu0 0
    %181 = vperm.xlu0 %180, %v171
    %v182 = vpop.permute.xlu0 %181
    %185 = vset.pattern.permute.xlu0 0
    %186 = vperm.xlu0 %185, %v172
    %v187 = vpop.permute.xlu0 %186
    %190 = vset.pattern.permute.xlu0 0
    %191 = vperm.xlu0 %190, %v173
    %v192 = vpop.permute.xlu0 %191
    %v194 = vmul.f32 %v130, %v177
    %v195 = vmul.f32 %v133, %v182
    %v196 = vmul.f32 %v136, %v187
    %v197 = vmul.f32 %v139, %v192
    %v198 = vmul.f32 %v159, %v177
    %v199 = vmul.f32 %v162, %v182
    %v200 = vmul.f32 %v165, %v187
    %v201 = vmul.f32 %v168, %v192
    %v202 = vmul.f32 %v194, %v198
    %v203 = vmul.f32 %v195, %v199
    %v204 = vmul.f32 %v196, %v200
    %v205 = vmul.f32 %v197, %v201
    %v206 = vadd.f32 %v202, %v203
    %v207 = vadd.f32 %v206, %v204
    %v208 = vadd.f32 %v207, %v205
    %v209 = vrot.slane %v208, 4
    %v210 = vadd.f32 %v208, %v209
    %v211 = vrot.slane %v210, 2
    %v212 = vadd.f32 %v210, %v211
    %v213 = vrot.slane %v212, 1
    %v214 = vadd.f32 %v212, %v213
    %v215 = vmul.f32 %v194, %v194
    %v216 = vmul.f32 %v195, %v195
    %v217 = vmul.f32 %v196, %v196
    %v218 = vmul.f32 %v197, %v197
    %v219 = vadd.f32 %v215, %v216
    %v220 = vadd.f32 %v219, %v217
    %v221 = vadd.f32 %v220, %v218
    %v222 = vrot.slane %v221, 4
    %v223 = vadd.f32 %v221, %v222
    %v224 = vrot.slane %v223, 2
    %v225 = vadd.f32 %v223, %v224
    %v226 = vrot.slane %v225, 1
    %v227 = vadd.f32 %v225, %v226
    %v228 = vmul.f32 %v198, %v198
    %v229 = vmul.f32 %v199, %v199
    %v230 = vmul.f32 %v200, %v200
    %v231 = vmul.f32 %v201, %v201
    %v232 = vadd.f32 %v228, %v229
    %v233 = vadd.f32 %v232, %v230
    %v234 = vadd.f32 %v233, %v231
    %v235 = vrot.slane %v234, 4
    %v236 = vadd.f32 %v234, %v235
    %v237 = vrot.slane %v236, 2
    %v238 = vadd.f32 %v236, %v237
    %v239 = vrot.slane %v238, 1
    %v240 = vadd.f32 %v238, %v239
    %v241 = vmax.f32 %v227, 1e-16
    %v242 = vrsqrt.pop %v241
    %v243 = vmul.f32 %v242, %v241
    %v244 = vmul.f32 %v243, %v242
    %v245 = vmul.f32 0.5, %v244
    %v246 = vsub.f32 1.5, %v245
    %v247 = vmul.f32 %v242, %v246
    %vm248 = vweird.f32 %v241
    %vm249 = vweird.f32 %v242
    %vm250 = vmor %vm248, %vm249
    %v251 = vsel %vm250, %v242, %v247
    %v252 = vmax.f32 %v240, 1e-16
    %v253 = vrsqrt.pop %v252
    %v254 = vmul.f32 %v253, %v252
    %v255 = vmul.f32 %v254, %v253
    %v256 = vmul.f32 0.5, %v255
    %v257 = vsub.f32 1.5, %v256
    %v258 = vmul.f32 %v253, %v257
    %vm259 = vweird.f32 %v252
    %vm260 = vweird.f32 %v253
    %vm261 = vmor %vm259, %vm260
    %v262 = vsel %vm261, %v253, %v258
    %v263 = vmul.f32 %v251, %v262
    %v264 = vmul.f32 %v214, %v263
    %v265 = vld [vmem:[%s3] sm:$0xff]
    %v266 = vld [vmem:[%s3 + $0x8] sm:$0xff]
    %v267 = vld [vmem:[%s3 + $0x10] sm:$0xff]
    %v268 = vld [vmem:[%s3 + $0x18] sm:$0xff]
    %v269 = vld [vmem:[%s4] sm:$0xff]
    %v270 = vld [vmem:[%s4 + $0x8] sm:$0xff]
    %v271 = vld [vmem:[%s4 + $0x10] sm:$0xff]
    %v272 = vld [vmem:[%s4 + $0x18] sm:$0xff]
    %274 = vset.pattern.permute.xlu0 0
    %275 = vperm.xlu0 %274, %v265
    %v276 = vpop.permute.xlu0 %275
    %279 = vset.pattern.permute.xlu0 0
    %280 = vperm.xlu0 %279, %v266
    %v281 = vpop.permute.xlu0 %280
    %284 = vset.pattern.permute.xlu0 0
    %285 = vperm.xlu0 %284, %v267
    %v286 = vpop.permute.xlu0 %285
    %289 = vset.pattern.permute.xlu0 0
    %290 = vperm.xlu0 %289, %v268
    %v291 = vpop.permute.xlu0 %290
    %v293 = vmul.f32 %v276, %v264
    %v294 = vmul.f32 %v281, %v264
    %v295 = vmul.f32 %v286, %v264
    %v296 = vmul.f32 %v291, %v264
    %297 = vset.pattern.permute.xlu0 1
    %298 = vperm.xlu0 %297, %v265
    %v299 = vpop.permute.xlu0 %298
    %301 = vset.pattern.permute.xlu0 1
    %302 = vperm.xlu0 %301, %v266
    %v303 = vpop.permute.xlu0 %302
    %305 = vset.pattern.permute.xlu0 1
    %306 = vperm.xlu0 %305, %v267
    %v307 = vpop.permute.xlu0 %306
    %309 = vset.pattern.permute.xlu0 1
    %310 = vperm.xlu0 %309, %v268
    %v311 = vpop.permute.xlu0 %310
    %v313 = vmul.f32 %v299, %v214
    %v314 = vmul.f32 %v303, %v214
    %v315 = vmul.f32 %v307, %v214
    %v316 = vmul.f32 %v311, %v214
    %v317 = vadd.f32 %v293, %v313
    %v318 = vadd.f32 %v294, %v314
    %v319 = vadd.f32 %v295, %v315
    %v320 = vadd.f32 %v296, %v316
    %322 = vset.pattern.permute.xlu0 0
    %323 = vperm.xlu0 %322, %v269
    %v324 = vpop.permute.xlu0 %323
    %327 = vset.pattern.permute.xlu0 0
    %328 = vperm.xlu0 %327, %v270
    %v329 = vpop.permute.xlu0 %328
    %332 = vset.pattern.permute.xlu0 0
    %333 = vperm.xlu0 %332, %v271
    %v334 = vpop.permute.xlu0 %333
    %337 = vset.pattern.permute.xlu0 0
    %338 = vperm.xlu0 %337, %v272
    %v339 = vpop.permute.xlu0 %338
    %v341 = vadd.f32 %v317, %v324
    %v342 = vadd.f32 %v318, %v329
    %v343 = vadd.f32 %v319, %v334
    %v344 = vadd.f32 %v320, %v339
    %v345 = vmax.f32 %v341, 0.0
    %v346 = vmax.f32 %v342, 0.0
    %v347 = vmax.f32 %v343, 0.0
    %v348 = vmax.f32 %v344, 0.0
    %v349 = vld [vmem:[%s5] sm:$0xff]
    %v350 = vld [vmem:[%s5 + $0x8] sm:$0xff]
    %v351 = vld [vmem:[%s5 + $0x10] sm:$0xff]
    %v352 = vld [vmem:[%s5 + $0x18] sm:$0xff]
    %v353 = vld [vmem:[%s6] sm:$0xff]
    %v354 = vld [vmem:[%s6 + $0x8] sm:$0xff]
    %v355 = vld [vmem:[%s6 + $0x10] sm:$0xff]
    %v356 = vld [vmem:[%s6 + $0x18] sm:$0xff]
    %358 = vset.pattern.permute.xlu0 0
    %359 = vperm.xlu0 %358, %v353
    %v360 = vpop.permute.xlu0 %359
    %363 = vset.pattern.permute.xlu0 0
    %364 = vperm.xlu0 %363, %v354
    %v365 = vpop.permute.xlu0 %364
    %368 = vset.pattern.permute.xlu0 0
    %369 = vperm.xlu0 %368, %v355
    %v370 = vpop.permute.xlu0 %369
    %373 = vset.pattern.permute.xlu0 0
    %374 = vperm.xlu0 %373, %v356
    %v375 = vpop.permute.xlu0 %374
    %vm377 = vcmask 261120
    %v379 = vsel %vm377, %v349, 0
    %v382 = vsel %vm377, %v350, 0
    %v385 = vsel %vm377, %v351, 0
    %v388 = vsel %vm377, %v352, 0
    %390 = vmatpush.msra.mxu0 0.0
    %391 = vmatpush.msra.mxu0 0.0
    %392 = vmatpush.msra.mxu0 0.0
    %393 = vmatpush.msra.mxu0 0.0
    %394 = vmatpush.msra.mxu0 0.0
    %395 = vmatpush.msra.mxu0 0.0
    %396 = vmatpush.msra.mxu0 0.0
    %397 = vmatpush.msra.mxu0 0.0
    %398 = vmatpush.msra.mxu0 0.0
    %399 = vmatpush.msra.mxu0 0.0
    %400 = vmatpush.msra.mxu0 0.0
    %401 = vmatpush.msra.mxu0 0.0
    %402 = vmatpush.msra.mxu0 %v348
    %403 = vmatpush.msra.mxu0 %v347
    %404 = vmatpush.msra.mxu0 %v346
    %405 = vmatpush.msra.mxu0 %v345
    %406 = vmatmul.f32.gmra.mxu0 %v379
    %v407 = vpop.f32.mrf.mxu0
    %v408 = vadd.f32 %v360, %v407
    %409 = vmatmul.f32.gmra.mxu0 %v382
    %v410 = vpop.f32.mrf.mxu0
    %v411 = vadd.f32 %v365, %v410
    %412 = vmatmul.f32.gmra.mxu0 %v385
    %v413 = vpop.f32.mrf.mxu0
    %v414 = vadd.f32 %v370, %v413
    %415 = vmatmul.f32.gmra.mxu0 %v388
    %v416 = vpop.f32.mrf.mxu0
    %v417 = vadd.f32 %v375, %v416
    %418 = vdwg.mxu0
    %v419 = vmax.f32 %v408, 0.0
    %v420 = vmax.f32 %v411, 0.0
    %v421 = vmax.f32 %v414, 0.0
    %v422 = vmax.f32 %v417, 0.0
    %v423 = vld [vmem:[%s7] sm:$0xff]
    %v424 = vld [vmem:[%s7 + $0x8] sm:$0xff]
    %v425 = vld [vmem:[%s7 + $0x10] sm:$0xff]
    %v426 = vld [vmem:[%s7 + $0x18] sm:$0xff]
    %v427 = vld [vmem:[#allocation2] sm:$0x1]
    %429 = vset.pattern.permute.xlu0 0
    %430 = vperm.xlu0 %429, %v423
    %v431 = vpop.permute.xlu0 %430
    %434 = vset.pattern.permute.xlu0 0
    %435 = vperm.xlu0 %434, %v424
    %v436 = vpop.permute.xlu0 %435
    %439 = vset.pattern.permute.xlu0 0
    %440 = vperm.xlu0 %439, %v425
    %v441 = vpop.permute.xlu0 %440
    %444 = vset.pattern.permute.xlu0 0
    %445 = vperm.xlu0 %444, %v426
    %v446 = vpop.permute.xlu0 %445
    %v448 = vmul.f32 %v419, %v431
    %v449 = vmul.f32 %v420, %v436
    %v450 = vmul.f32 %v421, %v441
    %v451 = vmul.f32 %v422, %v446
    %v452 = vadd.f32 %v448, %v449
    %v453 = vadd.f32 %v452, %v450
    %v454 = vadd.f32 %v453, %v451
    %v455 = vrot.slane %v454, 4
    %v456 = vadd.f32 %v454, %v455
    %v457 = vrot.slane %v456, 2
    %v458 = vadd.f32 %v456, %v457
    %v459 = vrot.slane %v458, 1
    %v460 = vadd.f32 %v458, %v459
    %462 = vset.pattern.permute.xlu0 0
    %463 = vperm.xlu0 %462, %v427
    %v464 = vpop.permute.xlu0 %463
    %v466 = vperm.slane %v464, 0
    %v467 = vadd.f32 %v460, %v466
    %468 = vst [vmem:[#allocation3] sm:$0x1] %v467
    // Predicated region
    $region38: #{tpu_custom_call.1} parent=1 // pred_check
      _
    $region39: #{tpu_custom_call.1} parent=1 // pred_check_branch
      %470 = sbr.rel (0) target = $region41
    $region40: #{tpu_custom_call.1} parent=1 // pred_region
      %472 = vsyncadd [#allocation4], 0
      %s474 = sshll.u32 [#allocation3], 4
      %s475 = int_to_ptr.vmem [resolvable:$true] %s474
      %s476 = sshll.u32 %s9, 4
      %s477 = int_to_ptr.hbm [resolvable:$true] %s476
      %479 = dma.vmem_to_hbm [thread:$0]  %s475, 16, %s477, [#allocation4]
    $region41: #{tpu_custom_call.1} parent=1 // pred_fallthru
      _
    // Predicated region
    $region42: #{tpu_custom_call.1} parent=1 // pred_check
      _
    $region43: #{tpu_custom_call.1} parent=1 // pred_check_branch
      %481 = sbr.rel (0) target = $region45
    $region44: #{tpu_custom_call.1} parent=1 // pred_region
      %483 = dma.done [#allocation4], 16
    $region45: #{tpu_custom_call.1} parent=1 // pred_fallthru
      _
    %484 = vsyncpa [#allocation4], 1

</llo_original>
